<compile_context>
chip_gen: v5e
topology: v5e:2x2
jax: 0.10.0
libtpu: 0.0.40
codegen_flags: <defaults>
</compile_context>

<pallas_src>
import functools

import jax
import jax.numpy as jnp
from jax import lax
from jax.experimental import pallas as pl
from jax.experimental.pallas import tpu as pltpu


def _focal_loss_kernel(x_ref, t_ref, o_ref, *, gamma, n_rows, tile_n):
    """One batch tile: per-row focal loss, reduced to a single partial sum."""
    x = x_ref[...].astype(jnp.float32)
    t = t_ref[...].astype(jnp.float32)

    if n_rows % tile_n != 0:
        # Edge tile: rows >= n_rows were never DMA'd (stale VMEM, possibly
        # NaN/Inf).  Neutralize BEFORE the log: x := 1 (log -> ~0), t := 0.
        row0 = pl.program_id(0) * tile_n
        rows = row0 + lax.broadcasted_iota(jnp.int32, (tile_n, 1), 0)
        valid = rows < n_rows
        x = jnp.where(valid, x, 1.0)
        t = jnp.where(valid, t, 0.0)

    x = jnp.clip(x, 1e-9, 1.0 - 1e-9)

    # per-row cross entropy:  (-t * log(x)).sum(-1)
    ce = jnp.sum(t * (-jnp.log(x)), axis=-1, keepdims=True)       # (tile_n, 1)

    # per-row focal weight:   ((1 - x)**gamma * t).sum(-1)
    one_minus = 1.0 - x
    if gamma == 2:
        focal = one_minus * one_minus          # VPU-only; keeps EUP for log
    elif isinstance(gamma, int):
        focal = lax.integer_pow(one_minus, gamma)
    else:
        # Non-integer gamma: exp(gamma*log(1-x)) path, 2 extra EUP ops/element.
        focal = one_minus ** gamma
    w = jnp.sum(focal * t, axis=-1, keepdims=True)                # (tile_n, 1)

    partial = jnp.sum(w * ce)                                     # tile partial
    # Full (8,128) lane-dense tile store (unmasked vst); host reads [0, 0].
    o_ref[...] = jnp.full(o_ref.shape, partial, dtype=jnp.float32)


def _pick_tile_n(n, c, itemsize):
    """Row tile (multiple of 8): ~2 MiB per streamed input block, >=2 tiles."""
    target_block_bytes = 2 * 1024 * 1024
    tile_n = max(8, target_block_bytes // max(1, c * itemsize))
    tile_n = min(tile_n, 2048)

    # Keep >=2 (>=4 for larger batches) grid steps so the "parallel" axis can
    # shard across v7x's two TensorCores and the pipeline overlaps DMA/compute.
    if n > 64:
        min_tiles = 4
    elif n > 8:
        min_tiles = 2
    else:
        min_tiles = 1
    rows_for_min = max(8, (pl.cdiv(n, min_tiles) // 8) * 8)
    tile_n = min(tile_n, rows_for_min)

    return max(8, (tile_n // 8) * 8)


def focal_loss(inputs, targets, *, gamma=2):
    """Pallas TPU implementation of FocalLoss.forward. Returns a scalar."""
    assert inputs.shape == targets.shape and inputs.ndim == 2
    n, c = inputs.shape
    x_item = jnp.dtype(inputs.dtype).itemsize
    t_item = jnp.dtype(targets.dtype).itemsize

    tile_n = _pick_tile_n(n, c, max(x_item, t_item))
    num_tiles = pl.cdiv(n, tile_n)

    # VMEM budget: 2 streamed inputs x double-buffer x block  +  ~3 full-tile
    # f32 intermediates (clipped x, cast t, product chains)  +  output blocks.
    block_in_bytes = tile_n * c * (x_item + t_item)
    f32_tmp_bytes = 3 * tile_n * c * 4
    out_bytes = 2 * 8 * 128 * 4
    working_set = 2 * block_in_bytes + f32_tmp_bytes + out_bytes
    try:
        vmem_cap = int(pltpu.get_tpu_info().vmem_capacity_bytes)
    except Exception:
        vmem_cap = 64 * 1024 * 1024            # v7x per-TC capacity (smallest)
    vmem_limit = int(min(max(working_set + (8 << 20), 16 << 20),
                         vmem_cap - (8 << 20)))

    kernel = functools.partial(_focal_loss_kernel, gamma=gamma,
                               n_rows=n, tile_n=tile_n)

    cost = pl.CostEstimate(
        flops=8 * n * c,
        transcendentals=n * c,                  # one log per element
        bytes_accessed=n * c * (x_item + t_item) + num_tiles * 8 * 128 * 4,
    )

    partials = pl.pallas_call(
        kernel,
        out_shape=jax.ShapeDtypeStruct((num_tiles, 8, 128), jnp.float32),
        grid=(num_tiles,),
        in_specs=[
            pl.BlockSpec((tile_n, c), lambda i: (i, 0)),
            pl.BlockSpec((tile_n, c), lambda i: (i, 0)),
        ],
        out_specs=pl.BlockSpec((1, 8, 128), lambda i: (i, 0, 0)),
        compiler_params=pltpu.CompilerParams(
            dimension_semantics=("parallel",),  # no cross-tile carry
            vmem_limit_bytes=vmem_limit,
        ),
        cost_estimate=cost,
    )(inputs, targets)

    # Final reduction + mean in plain JAX (f32), dividing by the true N.
    return jnp.sum(partials[:, 0, 0]) / n


def _focal_loss_ref(inputs, targets, gamma=2):
    x = jnp.clip(inputs.astype(jnp.float32), 1e-9, 1.0 - 1e-9)
    t = targets.astype(jnp.float32)
    ce = jnp.sum(-t * jnp.log(x), axis=-1)
    w = jnp.sum((1.0 - x) ** gamma * t, axis=-1)
    return jnp.mean(w * ce)


if __name__ == "__main__":
    key = jax.random.PRNGKey(0)
    k1, k2 = jax.random.split(key)

    N, C = 16, 32  # small batch of probability vectors (2 grid tiles)
    logits = jax.random.normal(k1, (N, C), dtype=jnp.float32)
    inputs = jax.nn.softmax(logits, axis=-1)                 # "input" probabilities
    labels = jax.random.randint(k2, (N,), 0, C)
    targets = jax.nn.one_hot(labels, C, dtype=jnp.float32)   # one-hot targets

    loss = focal_loss(inputs, targets, gamma=2)
    loss = jax.block_until_ready(loss)

    ref = _focal_loss_ref(inputs, targets, gamma=2)
    assert jnp.allclose(loss, ref, rtol=1e-5, atol=1e-6), (loss, ref)

    # Non-multiple batch size: exercises the masked (unpadded) edge tile.
    N2 = 13
    inputs2 = jax.nn.softmax(jax.random.normal(k1, (N2, C), jnp.float32), axis=-1)
    targets2 = jax.nn.one_hot(jax.random.randint(k2, (N2,), 0, C), C,
                              dtype=jnp.float32)
    loss2 = jax.block_until_ready(focal_loss(inputs2, targets2, gamma=2))
    ref2 = _focal_loss_ref(inputs2, targets2, gamma=2)
    assert jnp.allclose(loss2, ref2, rtol=1e-5, atol=1e-6), (loss2, ref2)

    print("KERNEL_OK")
</pallas_src>

<mosaic_0001>
module attributes {stable_mosaic.version = 11 : i64} {
  func.func @_focal_loss_kernel(%arg0: i32, %arg1: memref<8x32xf32, #tpu.memory_space<vmem>>, %arg2: memref<8x32xf32, #tpu.memory_space<vmem>>, %arg3: memref<1x8x128xf32, #tpu.memory_space<vmem>>) attributes {dimension_semantics = [#tpu.dimension_semantics<parallel>], iteration_bounds = array<i64: 2>, scalar_prefetch = 0 : i64, scratch_operands = 0 : i64, tpu.core_type = #tpu.core_type<tc>, window_params = [{transform_indices = @transform_0, window_bounds = array<i64: 8, 32>}, {transform_indices = @transform_1, window_bounds = array<i64: 8, 32>}, {transform_indices = @transform_2, window_bounds = array<i64: 1, 8, 128>}]} {
    %c0 = arith.constant 0 : index
    %c0_0 = arith.constant 0 : index
    %0 = vector.load %arg1[%c0, %c0_0] : memref<8x32xf32, #tpu.memory_space<vmem>>, vector<8x32xf32>
    %c0_1 = arith.constant 0 : index
    %c0_2 = arith.constant 0 : index
    %1 = vector.load %arg2[%c0_1, %c0_2] : memref<8x32xf32, #tpu.memory_space<vmem>>, vector<8x32xf32>
    %cst = arith.constant 9.99999971E-10 : f32
    %cst_3 = arith.constant 1.000000e+00 : f32
    %2 = vector.broadcast %cst : f32 to vector<8x32xf32>
    %3 = arith.maximumf %2, %0 : vector<8x32xf32>
    %4 = vector.broadcast %cst_3 : f32 to vector<8x32xf32>
    %5 = arith.minimumf %4, %3 : vector<8x32xf32>
    %6 = math.log %5 : vector<8x32xf32>
    %cst_4 = arith.constant 0.000000e+00 : f32
    %7 = vector.broadcast %cst_4 : f32 to vector<8x32xf32>
    %8 = arith.subf %7, %6 : vector<8x32xf32>
    %9 = arith.mulf %1, %8 : vector<8x32xf32>
    %cst_5 = arith.constant dense<0.000000e+00> : vector<8xf32>
    %10 = vector.multi_reduction <add>, %9, %cst_5 [1] : vector<8x32xf32> to vector<8xf32>
    %11 = vector.shape_cast %10 : vector<8xf32> to vector<8x1xf32>
    %cst_6 = arith.constant 1.000000e+00 : f32
    %12 = vector.broadcast %cst_6 : f32 to vector<8x32xf32>
    %13 = arith.subf %12, %5 : vector<8x32xf32>
    %14 = arith.mulf %13, %13 : vector<8x32xf32>
    %15 = arith.mulf %14, %1 : vector<8x32xf32>
    %cst_7 = arith.constant dense<0.000000e+00> : vector<8xf32>
    %16 = vector.multi_reduction <add>, %15, %cst_7 [1] : vector<8x32xf32> to vector<8xf32>
    %17 = vector.shape_cast %16 : vector<8xf32> to vector<8x1xf32>
    %18 = arith.mulf %17, %11 : vector<8x1xf32>
    %19 = vector.shape_cast %18 : vector<8x1xf32> to vector<1x8x1xf32>
    %cst_8 = arith.constant dense<0.000000e+00> : vector<1xf32>
    %20 = vector.multi_reduction <add>, %19, %cst_8 [1, 2] : vector<1x8x1xf32> to vector<1xf32>
    %21 = vector.shape_cast %20 : vector<1xf32> to vector<1x1x1xf32>
    %22 = vector.extract %21[0, 0, 0] : f32 from vector<1x1x1xf32>
    %23 = vector.broadcast %22 : f32 to vector<1x8x128xf32>
    %c0_9 = arith.constant 0 : index
    %c0_10 = arith.constant 0 : index
    %c0_11 = arith.constant 0 : index
    %24 = vector.load %arg3[%c0_9, %c0_10, %c0_11] : memref<1x8x128xf32, #tpu.memory_space<vmem>>, vector<1x8x128xf32>
    tpu.vector_store %arg3[%c0_9, %c0_10, %c0_11], %23 {strides = array<i32>} : memref<1x8x128xf32, #tpu.memory_space<vmem>>, vector<1x8x128xf32>,
    return
  }
  func.func @transform_0(%arg0: i32) -> (i32, i32) {
    %c0_i32 = arith.constant 0 : i32
    %c0_i32_0 = arith.constant 0 : i32
    return %arg0, %c0_i32 : i32, i32
  }
  func.func @transform_1(%arg0: i32) -> (i32, i32) {
    %c0_i32 = arith.constant 0 : i32
    %c0_i32_0 = arith.constant 0 : i32
    return %arg0, %c0_i32 : i32, i32
  }
  func.func @transform_2(%arg0: i32) -> (i32, i32, i32) {
    %c0_i32 = arith.constant 0 : i32
    %c0_i32_0 = arith.constant 0 : i32
    %c0_i32_1 = arith.constant 0 : i32
    return %arg0, %c0_i32, %c0_i32_0 : i32, i32, i32
  }
}

</mosaic_0001>

<llo_original>
// kernel: tpu_custom_call.1
$region0: #{tpu_custom_call.1}
  #allocation0 [shape = 'u32[]', space=smem, size = 0x4, offset = 0x4, fixed_abs, tag = 'smem constant byte address 0x4 - core index']
  #allocation1 [shape = 'u32[72,128]{1,0:T(1,128)}', space=vmem, size = 0x9000, scoped, tag = 'internal scratch']
  %s0 = inlined_call_operand.hbm [shape: f32[16,32], index: 0, kind: input, shape index: {}]
  %s1 = inlined_call_operand.hbm [shape: f32[16,32], index: 1, kind: input, shape index: {}]
  %s2 = inlined_call_operand.hbm [shape: f32[2,8,128], index: 2, kind: output, shape index: {}]
  %s3 = sld [smem:[#allocation0]]
  $region49: #{tpu_custom_call.1} parent=0
    _
  %s5 = ssub.s32 1, %s3
  %s6 = scalar_select 0, %s5, %s3
  $region1: #{tpu_custom_call.1} parent=0
    #allocation2 [shape = 'u8[8192]{0}', space=vmem, size = 0x2000, scoped, tag = 'input window, operand 0']
    #allocation3 [shape = 's32[2]{0}', space=sflag, size = 0x8, scoped, tag = 'scoped memory for tpu_custom_call.1']
    #allocation4 [shape = 's32[2]{0}', space=sflag, size = 0x8, scoped, tag = 'scoped memory for tpu_custom_call.1']
    #allocation5 [shape = 'u8[8192]{0}', space=vmem, size = 0x2000, scoped, tag = 'input window, operand 1']
    #allocation6 [shape = 's32[2]{0}', space=sflag, size = 0x8, scoped, tag = 'scoped memory for tpu_custom_call.1']
    #allocation7 [shape = 'u8[8192]{0}', space=vmem, size = 0x2000, scoped, tag = 'output window, operand 0']
    %7 = vsyncpa [#allocation3], 0
    %s8 = scalar_lea.sflag [#allocation3], 1
    %9 = vsyncpa %s8, 0
    %10 = vsyncpa [#allocation6], 0
    %s11 = scalar_lea.sflag [#allocation6], 1
    %12 = vsyncpa %s11, 0
    %13 = vsyncpa [#allocation4], 0
    %s14 = scalar_lea.sflag [#allocation4], 1
    %15 = vsyncpa %s14, 0
    loop: start=0, step=1, limit=4
    $region2: #{tpu_custom_call.1} parent=1 // loop_pre_header
      _
    $region3: #{tpu_custom_call.1} parent=1 // loop_header
      %s17 = sphi 0, %s21
      %p18 = scmp.ge.s32.totalorder %s17, 4
      %s27 = sphi 0, %s29
      %s30 = sphi 0, %s27
      %s31 = sphi 0, %s30
      %s47 = sphi 0, %s31
      %s53 = sphi 0, %s55
      %s56 = sphi 0, %s53
      %s57 = sphi 0, %s56
      %s73 = sphi 0, %s57
      %s79 = sphi 0, %s81
      %s82 = sphi 0, %s79
      %s83 = sphi 0, %s82
      %s99 = sphi 0, %s83
    $region4: #{tpu_custom_call.1} parent=1 // loop_header_branch
      %20 = sbr.rel (%p18) target = $region8
    $region5: #{tpu_custom_call.1} parent=1 // loop_body
      %s22 = ssub.s32 %s17, 1
      %s23 = ssub.s32 %s17, 2
      %s24 = sadd.s32 %s17, 1
      %s25 = ssub.s32 %s17, %s24
      %p26 = scmp.eq.s32.totalorder %s25, 0
      %s28 = sadd.s32 %s27, 1
      %s29 = scalar_select %p26, %s27, %s28
      %p32 = pneg %p26
      %p33 = scmp.eq.s32.totalorder %s17, 1
      %p34 = por %p32, %p33
      %p35 = scmp.ne.s32.totalorder %s27, %s30
      %p36 = scmp.eq.s32.totalorder %s17, 0
      %p37 = por %p35, %p36
      %p38 = scmp.ne.s32.totalorder %s27, %s30
      %p39 = scmp.eq.s32.totalorder %s22, 1
      %p40 = por %p38, %p39
      %p41 = scmp.ne.s32.totalorder %s30, %s31
      %p42 = scmp.eq.s32.totalorder %s22, 0
      %p43 = por %p41, %p42
      %p44 = scmp.ne.s32.totalorder %s30, %s31
      %p45 = scmp.eq.s32.totalorder %s23, 1
      %p46 = por %p44, %p45
      %p48 = scmp.ne.s32.totalorder %s31, %s47
      %p49 = scmp.eq.s32.totalorder %s23, 0
      %p50 = por %p48, %p49
      %s51 = ssub.s32 %s17, %s24
      %p52 = scmp.eq.s32.totalorder %s51, 0
      %s54 = sadd.s32 %s53, 1
      %s55 = scalar_select %p52, %s53, %s54
      %p58 = pneg %p52
      %p59 = scmp.eq.s32.totalorder %s17, 1
      %p60 = por %p58, %p59
      %p61 = scmp.ne.s32.totalorder %s53, %s56
      %p62 = scmp.eq.s32.totalorder %s17, 0
      %p63 = por %p61, %p62
      %p64 = scmp.ne.s32.totalorder %s53, %s56
      %p65 = scmp.eq.s32.totalorder %s22, 1
      %p66 = por %p64, %p65
      %p67 = scmp.ne.s32.totalorder %s56, %s57
      %p68 = scmp.eq.s32.totalorder %s22, 0
      %p69 = por %p67, %p68
      %p70 = scmp.ne.s32.totalorder %s56, %s57
      %p71 = scmp.eq.s32.totalorder %s23, 1
      %p72 = por %p70, %p71
      %p74 = scmp.ne.s32.totalorder %s57, %s73
      %p75 = scmp.eq.s32.totalorder %s23, 0
      %p76 = por %p74, %p75
      %s77 = ssub.s32 %s17, %s24
      %p78 = scmp.eq.s32.totalorder %s77, 0
      %s80 = sadd.s32 %s79, 1
      %s81 = scalar_select %p78, %s79, %s80
      %p84 = pneg %p78
      %p85 = scmp.eq.s32.totalorder %s17, 1
      %p86 = por %p84, %p85
      %p87 = scmp.ne.s32.totalorder %s79, %s82
      %p88 = scmp.eq.s32.totalorder %s17, 0
      %p89 = por %p87, %p88
      %p90 = scmp.ne.s32.totalorder %s79, %s82
      %p91 = scmp.eq.s32.totalorder %s22, 1
      %p92 = por %p90, %p91
      %p93 = scmp.ne.s32.totalorder %s82, %s83
      %p94 = scmp.eq.s32.totalorder %s22, 0
      %p95 = por %p93, %p94
      %p96 = scmp.ne.s32.totalorder %s82, %s83
      %p97 = scmp.eq.s32.totalorder %s23, 1
      %p98 = por %p96, %p97
      %p100 = scmp.ne.s32.totalorder %s83, %s99
      %p101 = scmp.eq.s32.totalorder %s23, 0
      %p102 = por %p100, %p101
      %p103 = scmp.le.s32.totalorder 1, %s17
      %p104 = scmp.lt.s32.totalorder %s17, 3
      %p105 = pnand %p103, %p104
      %p106 = pneg %p105
      // Predicated region
      $region9: #{tpu_custom_call.1} parent=5 // pred_check
        _
      $region10: #{tpu_custom_call.1} parent=5 // pred_check_branch
        %108 = sbr.rel (%p105) target = $region12
      $region11: #{tpu_custom_call.1} parent=5 // pred_region
        %s109 = ssub.s32 %s17, 1
      $region12: #{tpu_custom_call.1} parent=5 // pred_fallthru
        _
      %p110 = scmp.lt.s32.totalorder %s17, 2
      // Predicated region
      $region13: #{tpu_custom_call.1} parent=5 // pred_check
        %p111 = pneg %p110
      $region14: #{tpu_custom_call.1} parent=5 // pred_check_branch
        %113 = sbr.rel (%p111) target = $region16
      $region15: #{tpu_custom_call.1} parent=5 // pred_region
        // Predicated region
        $region17: #{tpu_custom_call.1} parent=15 // pred_check
          %p114 = pneg %p37
        $region18: #{tpu_custom_call.1} parent=15 // pred_check_branch
          %116 = sbr.rel (%p114) target = $region20
        $region19: #{tpu_custom_call.1} parent=15 // pred_region
          %s117 = sand.u32 %s27, 1
          %s118 = scalar_lea.sflag [#allocation3], %s117
          %s119 = sand.u32 %s27, 1
          %s120 = smul.addr %s119, 8
          %s121 = scalar_lea.vmem [#allocation2], %s120
          %123 = vsyncadd %s118, 0
          %s124 = smul.addr %s17, 8
          %s125 = scalar_lea.hbm %s0, %s124
          %s127 = sshll.u32 %s125, 4
          %s128 = int_to_ptr.hbm [resolvable:$true] %s127
          %s129 = sshll.u32 %s121, 4
          %s130 = int_to_ptr.vmem [resolvable:$true] %s129
          %132 = dma.hbm_to_vmem [thread:$0]  %s128, 128, %s130, %s118
        $region20: #{tpu_custom_call.1} parent=15 // pred_fallthru
          _
        // Predicated region
        $region21: #{tpu_custom_call.1} parent=15 // pred_check
          %p133 = pneg %p63
        $region22: #{tpu_custom_call.1} parent=15 // pred_check_branch
          %135 = sbr.rel (%p133) target = $region24
        $region23: #{tpu_custom_call.1} parent=15 // pred_region
          %s136 = sand.u32 %s53, 1
          %s137 = scalar_lea.sflag [#allocation6], %s136
          %s138 = sand.u32 %s53, 1
          %s139 = smul.addr %s138, 8
          %s140 = scalar_lea.vmem [#allocation5], %s139
          %142 = vsyncadd %s137, 0
          %s143 = smul.addr %s17, 8
          %s144 = scalar_lea.hbm %s1, %s143
          %s146 = sshll.u32 %s144, 4
          %s147 = int_to_ptr.hbm [resolvable:$true] %s146
          %s148 = sshll.u32 %s140, 4
          %s149 = int_to_ptr.vmem [resolvable:$true] %s148
          %151 = dma.hbm_to_vmem [thread:$0]  %s147, 128, %s149, %s137
        $region24: #{tpu_custom_call.1} parent=15 // pred_fallthru
          _
      $region16: #{tpu_custom_call.1} parent=5 // pred_fallthru
        _
      %p152 = scmp.le.s32.totalorder 1, %s17
      %p153 = scmp.lt.s32.totalorder %s17, 3
      %p154 = pnand %p152, %p153
      %p155 = pneg %p154
      // Predicated region
      $region25: #{tpu_custom_call.1} parent=5 // pred_check
        _
      $region26: #{tpu_custom_call.1} parent=5 // pred_check_branch
        %157 = sbr.rel (%p154) target = $region28
      $region27: #{tpu_custom_call.1} parent=5 // pred_region
        %s158 = ssub.s32 %s17, 1
        %s159 = sand.u32 %s30, 1
        %s160 = scalar_lea.sflag [#allocation3], %s159
        %s161 = sand.u32 %s30, 1
        %s162 = smul.addr %s161, 8
        %s163 = scalar_lea.vmem [#allocation2], %s162
        // Predicated region
        $region29: #{tpu_custom_call.1} parent=27 // pred_check
          %p164 = pneg %p43
        $region30: #{tpu_custom_call.1} parent=27 // pred_check_branch
          %166 = sbr.rel (%p164) target = $region32
        $region31: #{tpu_custom_call.1} parent=27 // pred_region
          %168 = dma.done %s160, 128
        $region32: #{tpu_custom_call.1} parent=27 // pred_fallthru
          _
        %s169 = sand.u32 %s56, 1
        %s170 = scalar_lea.sflag [#allocation6], %s169
        %s171 = sand.u32 %s56, 1
        %s172 = smul.addr %s171, 8
        %s173 = scalar_lea.vmem [#allocation5], %s172
        // Predicated region
        $region33: #{tpu_custom_call.1} parent=27 // pred_check
          %p174 = pneg %p69
        $region34: #{tpu_custom_call.1} parent=27 // pred_check_branch
          %176 = sbr.rel (%p174) target = $region36
        $region35: #{tpu_custom_call.1} parent=27 // pred_region
          %178 = dma.done %s170, 128
        $region36: #{tpu_custom_call.1} parent=27 // pred_fallthru
          _
        %s179 = sand.u32 %s30, 1
        %s180 = scalar_lea.sflag [#allocation3], %s179
        %s181 = sand.u32 %s30, 1
        %s182 = smul.addr %s181, 8
        %s183 = scalar_lea.vmem [#allocation2], %s182
        %p184 = pneg %p43
        %p185 = pneg %p40
        %s186 = sand.u32 %s56, 1
        %s187 = scalar_lea.sflag [#allocation6], %s186
        %s188 = sand.u32 %s56, 1
        %s189 = smul.addr %s188, 8
        %s190 = scalar_lea.vmem [#allocation5], %s189
        %p191 = pneg %p69
        %p192 = pneg %p66
        %p193 = pneg %p95
        %p194 = pneg %p92
        %s195 = sand.u32 %s82, 1
        %s196 = scalar_lea.sflag [#allocation4], %s195
        %s197 = sand.u32 %s82, 1
        %s198 = smul.addr %s197, 8
        %s199 = scalar_lea.vmem [#allocation7], %s198
        %v200 = vld [vmem:[%s163] sm:$0xff]
        %v201 = vld [vmem:[%s173] sm:$0xff]
        %v202 = vmax.f32 %v200, 1e-09
        %v203 = vmin.f32 %v202, 1.0
        %v204 = vlog2.pop %v203
        %v205 = vmul.f32 %v204, 0.6931472
        %v206 = vsub.f32 0.0, %v205
        %v207 = vmul.f32 %v201, %v206
        %vm208 = vcmask 261120
        %v209 = vsel %vm208, %v207, 0.0
        %210 = vadd.xlane.f32.xlu0 %v209
        %v211 = vpop.xlane.xlu0 %210
        %v212 = vsub.f32 1.0, %v203
        %v213 = vmul.f32 %v212, %v212
        %v214 = vmul.f32 %v213, %v201
        %v215 = vsel %vm208, %v214, 0.0
        %216 = vadd.xlane.f32.xlu0 %v215
        %v217 = vpop.xlane.xlu0 %216
        %v218 = vmul.f32 %v217, %v211
        %vm219 = vcmask 7168
        %v220 = vsel %vm219, %v218, 0.0
        %221 = vadd.xlane.f32.xlu0 %v220
        %v222 = vpop.xlane.xlu0 %221
        %v223 = vrot.slane %v222, 4
        %v224 = vadd.f32 %v222, %v223
        %v225 = vrot.slane %v224, 2
        %v226 = vadd.f32 %v224, %v225
        %v227 = vrot.slane %v226, 1
        %v228 = vadd.f32 %v226, %v227
        %s229 = vtos %v228
        %v230 = vstv %s229
        %231 = vst [vmem:[%s199] sm:$0xff] %v230
        %s232 = sand.u32 %s82, 1
        %s233 = scalar_lea.sflag [#allocation4], %s232
        %s234 = sand.u32 %s82, 1
        %s235 = smul.addr %s234, 8
        %s236 = scalar_lea.vmem [#allocation7], %s235
        // Predicated region
        $region37: #{tpu_custom_call.1} parent=27 // pred_check
          %p237 = pneg %p92
        $region38: #{tpu_custom_call.1} parent=27 // pred_check_branch
          %239 = sbr.rel (%p237) target = $region40
        $region39: #{tpu_custom_call.1} parent=27 // pred_region
          %241 = vsyncadd %s233, 0
          %s242 = smul.addr %s22, 8
          %s243 = scalar_lea.hbm %s2, %s242
          %s245 = sshll.u32 %s236, 4
          %s246 = int_to_ptr.vmem [resolvable:$true] %s245
          %s247 = sshll.u32 %s243, 4
          %s248 = int_to_ptr.hbm [resolvable:$true] %s247
          %250 = dma.vmem_to_hbm [thread:$0]  %s246, 128, %s248, %s233
        $region40: #{tpu_custom_call.1} parent=27 // pred_fallthru
          _
      $region28: #{tpu_custom_call.1} parent=5 // pred_fallthru
        _
      %p251 = scmp.le.s32.totalorder 2, %s17
      // Predicated region
      $region41: #{tpu_custom_call.1} parent=5 // pred_check
        %p252 = pneg %p251
      $region42: #{tpu_custom_call.1} parent=5 // pred_check_branch
        %254 = sbr.rel (%p252) target = $region44
      $region43: #{tpu_custom_call.1} parent=5 // pred_region
        %s255 = ssub.s32 %s17, 2
        // Predicated region
        $region45: #{tpu_custom_call.1} parent=43 // pred_check
          %p256 = pneg %p98
        $region46: #{tpu_custom_call.1} parent=43 // pred_check_branch
          %258 = sbr.rel (%p256) target = $region48
        $region47: #{tpu_custom_call.1} parent=43 // pred_region
          %s259 = sand.u32 %s83, 1
          %s260 = scalar_lea.sflag [#allocation4], %s259
          %s261 = sand.u32 %s83, 1
          %s262 = smul.addr %s261, 8
          %s263 = scalar_lea.vmem [#allocation7], %s262
          %265 = dma.done %s260, 128
        $region48: #{tpu_custom_call.1} parent=43 // pred_fallthru
          _
      $region44: #{tpu_custom_call.1} parent=5 // pred_fallthru
        _
    $region6: #{tpu_custom_call.1} parent=1 // loop_footer
      %s21 = sadd.s32 1, %s17
    $region7: #{tpu_custom_call.1} parent=1 // loop_footer_branch
      %16 = sbr.rel target = $region3
    $region8: #{tpu_custom_call.1} parent=1 // loop_exit
      _
    %266 = vsyncpa [#allocation3], 1
    %s267 = scalar_lea.sflag [#allocation3], 1
    %268 = vsyncpa %s267, 1
    %269 = vsyncpa [#allocation6], 1
    %s270 = scalar_lea.sflag [#allocation6], 1
    %271 = vsyncpa %s270, 1
    %272 = vsyncpa [#allocation4], 1
    %s273 = scalar_lea.sflag [#allocation4], 1
    %274 = vsyncpa %s273, 1

</llo_original>
